<compile_context>
chip_gen: v7x
topology: tpu7x:2x2x1
jax: 0.10.0
libtpu: 0.0.40
codegen_flags: <defaults>
</compile_context>

<pallas_src>
import math
import functools

import jax
import jax.numpy as jnp
from jax import lax
from jax.experimental import pallas as pl
from jax.experimental.pallas import tpu as pltpu


def _round_up(v, m):
    return (v + m - 1) // m * m


def _linear_residual_kernel(*refs, scale, res_weight, weighting_type,
                            activation, has_bias):
    if has_bias:
        x_ref, w_ref, b_ref, xres_ref, o_ref, acc_ref = refs
    else:
        x_ref, w_ref, xres_ref, o_ref, acc_ref = refs
        b_ref = None

    k = pl.program_id(2)

    @pl.when(k == 0)
    def _():
        acc_ref[...] = jnp.zeros_like(acc_ref)

    # Contract on the last (lane) dim of both operands: x [tm,tk] @ w [tn,tk]^T
    # without any explicit transpose / XLU relayout inside the kernel.
    acc_ref[...] += lax.dot_general(
        x_ref[...], w_ref[...],
        dimension_numbers=(((1,), (1,)), ((), ())),
        preferred_element_type=jnp.float32)

    @pl.when(k == pl.num_programs(2) - 1)
    def _():
        out = acc_ref[...] * jnp.float32(scale)      # scalar scale in epilogue
        if b_ref is not None:
            out = out + b_ref[...]                   # bias already * lr_mul
        if activation is not None:
            out = jnp.where(out >= 0.0, out, 0.2 * out) * jnp.float32(math.sqrt(2.0))
        xr = xres_ref[...].astype(jnp.float32)
        if weighting_type == "shortcut":
            out = out + jnp.float32(res_weight) * xr
        else:  # "residual"
            out = jnp.float32(res_weight) * out + xr
        o_ref[...] = out.astype(o_ref.dtype)


def linear_residual(x, weight, bias, *, res_weight, weighting_type="residual",
                    lr_mul=1.0, activation=None, additional_scale=1.0,
                    tm=256, tn=512, tk=512):
    """Fused LinearResidual forward.

    x:      [batch, dim]  float32
    weight: [dim, dim]    float32 (PyTorch nn.Linear layout [out, in])
    bias:   [dim] float32 or None
    res_weight: scalar (config.weight)
    weighting_type: 'shortcut' or 'residual'
    """
    assert weighting_type in ("shortcut", "residual")
    M, K = x.shape
    N, K2 = weight.shape
    assert K == K2
    assert N == K, "residual/shortcut combination requires out_dim == in_dim"

    scale = 1.0 / math.sqrt(K) * lr_mul * additional_scale
    has_bias = bias is not None

    # Tile sizes: (8,128)-aligned, never bigger than the padded problem.
    tm = min(tm, _round_up(M, 8))
    tn = min(tn, _round_up(N, 128))
    tk = min(tk, _round_up(K, 128))
    Mp, Np, Kp = _round_up(M, tm), _round_up(N, tn), _round_up(K, tk)

    xp = x if (Mp, Kp) == (M, K) else jnp.pad(x, ((0, Mp - M), (0, Kp - K)))
    wp = weight if (Np, Kp) == (N, K) else jnp.pad(weight, ((0, Np - N), (0, Kp - K)))
    # Residual copy of x, padded to the output tiling (lane-dense N axis).
    xres = x if (Mp, Np) == (M, N) else jnp.pad(x, ((0, Mp - M), (0, Np - N)))

    grid = (Mp // tm, Np // tn, Kp // tk)

    in_specs = [
        pl.BlockSpec((tm, tk), lambda i, j, k: (i, k)),   # x (matmul operand)
        pl.BlockSpec((tn, tk), lambda i, j, k: (j, k)),   # weight [N, K]
    ]
    args = [xp, wp]
    if has_bias:
        bp = (bias.astype(jnp.float32) * lr_mul).reshape(1, N)
        if Np != N:
            bp = jnp.pad(bp, ((0, 0), (0, Np - N)))
        in_specs.append(pl.BlockSpec((1, tn), lambda i, j, k: (0, j)))
        args.append(bp)
    in_specs.append(pl.BlockSpec((tm, tn), lambda i, j, k: (i, j)))  # residual x
    args.append(xres)

    kernel = functools.partial(
        _linear_residual_kernel,
        scale=scale,
        res_weight=float(res_weight),
        weighting_type=weighting_type,
        activation=activation,
        has_bias=has_bias,
    )

    out_padded = pl.pallas_call(
        kernel,
        out_shape=jax.ShapeDtypeStruct((Mp, Np), x.dtype),
        grid_spec=pltpu.PrefetchScalarGridSpec(
            num_scalar_prefetch=0,
            grid=grid,
            in_specs=in_specs,
            out_specs=pl.BlockSpec((tm, tn), lambda i, j, k: (i, j)),
            scratch_shapes=[pltpu.VMEM((tm, tn), jnp.float32)],
        ),
        compiler_params=pltpu.CompilerParams(
            dimension_semantics=("parallel", "parallel", "arbitrary"),
            vmem_limit_bytes=48 * 1024 * 1024,
        ),
        cost_estimate=pl.CostEstimate(
            flops=2 * Mp * Np * Kp,
            bytes_accessed=4 * (Mp * Kp + Np * Kp + 2 * Mp * Np),
            transcendentals=0,
        ),
    )(*args)

    if (Mp, Np) != (M, N):
        out_padded = out_padded[:M, :N]
    return out_padded


def _reference(x, weight, bias, *, res_weight, weighting_type, lr_mul=1.0,
               activation=None, additional_scale=1.0):
    scale = 1.0 / math.sqrt(x.shape[-1]) * lr_mul * additional_scale
    out = x @ (weight * scale).T
    if bias is not None:
        out = out + bias * lr_mul
    if activation is not None:
        out = jnp.where(out >= 0, out, 0.2 * out) * math.sqrt(2.0)
    if weighting_type == "shortcut":
        return out + res_weight * x
    else:
        return res_weight * out + x


if __name__ == "__main__":
    key = jax.random.PRNGKey(0)
    kx, kw, kb = jax.random.split(key, 3)

    # Small shapes consistent with the module (batch=8, hidden=32).
    batch, dim = 8, 32
    lr_mul = 0.5
    res_weight = 0.7

    x = jax.random.normal(kx, (batch, dim), dtype=jnp.float32)
    weight = jax.random.normal(kw, (dim, dim), dtype=jnp.float32) / lr_mul
    bias = jax.random.normal(kb, (dim,), dtype=jnp.float32) * 0.1

    for wt in ("shortcut", "residual"):
        for act in (None, "fused_lrelu"):
            out = linear_residual(x, weight, bias, res_weight=res_weight,
                                  weighting_type=wt, lr_mul=lr_mul,
                                  activation=act)
            jax.block_until_ready(out)
            ref = _reference(x, weight, bias, res_weight=res_weight,
                             weighting_type=wt, lr_mul=lr_mul, activation=act)
            assert jnp.allclose(out, ref, atol=1e-4, rtol=1e-4), (wt, act)

    # Slightly larger case (no bias) exercising the (i, j, k) grid + accumulator.
    batch2, dim2 = 16, 256
    x2 = jax.random.normal(kx, (batch2, dim2), dtype=jnp.float32)
    w2 = jax.random.normal(kw, (dim2, dim2), dtype=jnp.float32)
    out2 = linear_residual(x2, w2, None, res_weight=1.5,
                           weighting_type="residual", activation=None,
                           tm=8, tn=128, tk=128)
    jax.block_until_ready(out2)
    ref2 = _reference(x2, w2, None, res_weight=1.5, weighting_type="residual",
                      activation=None)
    assert jnp.allclose(out2, ref2, atol=1e-4, rtol=1e-4)

    print("KERNEL_OK")
</pallas_src>

<mosaic_0001>
module attributes {stable_mosaic.version = 11 : i64} {
  func.func @_linear_residual_kernel(%arg0: i32, %arg1: i32, %arg2: i32, %arg3: memref<8x128xf32, #tpu.memory_space<vmem>>, %arg4: memref<128x128xf32, #tpu.memory_space<vmem>>, %arg5: memref<1x128xf32, #tpu.memory_space<vmem>>, %arg6: memref<8x128xf32, #tpu.memory_space<vmem>>, %arg7: memref<8x128xf32, #tpu.memory_space<vmem>>, %arg8: memref<8x128xf32, #tpu.memory_space<vmem>>) attributes {dimension_semantics = [#tpu.dimension_semantics<parallel>, #tpu.dimension_semantics<parallel>, #tpu.dimension_semantics<arbitrary>], iteration_bounds = array<i64: 1, 1, 1>, scalar_prefetch = 0 : i64, scratch_operands = 1 : i64, tpu.core_type = #tpu.core_type<tc>, window_params = [{transform_indices = @transform_0, window_bounds = array<i64: 8, 128>}, {transform_indices = @transform_1, window_bounds = array<i64: 128, 128>}, {transform_indices = @transform_2, window_bounds = array<i64: 1, 128>}, {transform_indices = @transform_3, window_bounds = array<i64: 8, 128>}, {transform_indices = @transform_4, window_bounds = array<i64: 8, 128>}]} {
    %c0_i32 = arith.constant 0 : i32
    %0 = arith.cmpi eq, %arg2, %c0_i32 : i32
    %1 = arith.extui %0 : i1 to i32
    %c0_i32_0 = arith.constant 0 : i32
    %2 = arith.cmpi ne, %1, %c0_i32_0 : i32
    scf.if %2 {
      %cst_10 = arith.constant 0.000000e+00 : f32
      %12 = vector.broadcast %cst_10 : f32 to vector<8x128xf32>
      %c0_11 = arith.constant 0 : index
      %c0_12 = arith.constant 0 : index
      %13 = vector.load %arg8[%c0_11, %c0_12] : memref<8x128xf32, #tpu.memory_space<vmem>>, vector<8x128xf32>
      tpu.vector_store %arg8[%c0_11, %c0_12], %12 {strides = array<i32>} : memref<8x128xf32, #tpu.memory_space<vmem>>, vector<8x128xf32>,
    } else {
    }
    %c0 = arith.constant 0 : index
    %c0_1 = arith.constant 0 : index
    %3 = vector.load %arg8[%c0, %c0_1] : memref<8x128xf32, #tpu.memory_space<vmem>>, vector<8x128xf32>
    %c0_2 = arith.constant 0 : index
    %c0_3 = arith.constant 0 : index
    %4 = vector.load %arg3[%c0_2, %c0_3] : memref<8x128xf32, #tpu.memory_space<vmem>>, vector<8x128xf32>
    %c0_4 = arith.constant 0 : index
    %c0_5 = arith.constant 0 : index
    %5 = vector.load %arg4[%c0_4, %c0_5] : memref<128x128xf32, #tpu.memory_space<vmem>>, vector<128x128xf32>
    %cst = arith.constant dense<0.000000e+00> : vector<8x128xf32>
    %6 = tpu.matmul %4, %5, %cst {dimension_numbers = #tpu.dot_dimension_numbers<[1], [1], [0], [0], [0, 0, 1, 0], [], []>} : vector<8x128xf32>, vector<128x128xf32>, vector<8x128xf32> -> vector<8x128xf32>
    %7 = arith.addf %3, %6 : vector<8x128xf32>
    %c0_6 = arith.constant 0 : index
    %c0_7 = arith.constant 0 : index
    %8 = vector.load %arg8[%c0_6, %c0_7] : memref<8x128xf32, #tpu.memory_space<vmem>>, vector<8x128xf32>
    tpu.vector_store %arg8[%c0_6, %c0_7], %7 {strides = array<i32>} : memref<8x128xf32, #tpu.memory_space<vmem>>, vector<8x128xf32>,
    %c0_i32_8 = arith.constant 0 : i32
    %9 = arith.cmpi eq, %arg2, %c0_i32_8 : i32
    %10 = arith.extui %9 : i1 to i32
    %c0_i32_9 = arith.constant 0 : i32
    %11 = arith.cmpi ne, %10, %c0_i32_9 : i32
    scf.if %11 {
      %c0_10 = arith.constant 0 : index
      %c0_11 = arith.constant 0 : index
      %12 = vector.load %arg8[%c0_10, %c0_11] : memref<8x128xf32, #tpu.memory_space<vmem>>, vector<8x128xf32>
      %cst_12 = arith.constant 0.0883883461 : f32
      %13 = vector.broadcast %cst_12 : f32 to vector<8x128xf32>
      %14 = arith.mulf %12, %13 : vector<8x128xf32>
      %c0_13 = arith.constant 0 : index
      %c0_14 = arith.constant 0 : index
      %15 = vector.load %arg5[%c0_13, %c0_14] : memref<1x128xf32, #tpu.memory_space<vmem>>, vector<1x128xf32>
      %16 = vector.broadcast %15 : vector<1x128xf32> to vector<8x128xf32>
      %17 = arith.addf %14, %16 : vector<8x128xf32>
      %c0_15 = arith.constant 0 : index
      %c0_16 = arith.constant 0 : index
      %18 = vector.load %arg6[%c0_15, %c0_16] : memref<8x128xf32, #tpu.memory_space<vmem>>, vector<8x128xf32>
      %cst_17 = arith.constant 0.699999988 : f32
      %19 = vector.broadcast %cst_17 : f32 to vector<8x128xf32>
      %20 = arith.mulf %19, %18 : vector<8x128xf32>
      %21 = arith.addf %17, %20 : vector<8x128xf32>
      %c0_18 = arith.constant 0 : index
      %c0_19 = arith.constant 0 : index
      %22 = vector.load %arg7[%c0_18, %c0_19] : memref<8x128xf32, #tpu.memory_space<vmem>>, vector<8x128xf32>
      tpu.vector_store %arg7[%c0_18, %c0_19], %21 {strides = array<i32>} : memref<8x128xf32, #tpu.memory_space<vmem>>, vector<8x128xf32>,
    } else {
    }
    return
  }
  func.func @transform_0(%arg0: i32, %arg1: i32, %arg2: i32) -> (i32, i32) {
    %c0_i32 = arith.constant 0 : i32
    return %arg0, %arg2 : i32, i32
  }
  func.func @transform_1(%arg0: i32, %arg1: i32, %arg2: i32) -> (i32, i32) {
    %c0_i32 = arith.constant 0 : i32
    return %arg1, %arg2 : i32, i32
  }
  func.func @transform_2(%arg0: i32, %arg1: i32, %arg2: i32) -> (i32, i32) {
    %c0_i32 = arith.constant 0 : i32
    %c0_i32_0 = arith.constant 0 : i32
    return %c0_i32, %arg1 : i32, i32
  }
  func.func @transform_3(%arg0: i32, %arg1: i32, %arg2: i32) -> (i32, i32) {
    %c0_i32 = arith.constant 0 : i32
    return %arg0, %arg1 : i32, i32
  }
  func.func @transform_4(%arg0: i32, %arg1: i32, %arg2: i32) -> (i32, i32) {
    %c0_i32 = arith.constant 0 : i32
    return %arg0, %arg1 : i32, i32
  }
}

</mosaic_0001>

<llo_original>
// kernel: tpu_custom_call.1
$region0: #{tpu_custom_call.1}
  #allocation0 [shape = 'u32[]', space=smem, size = 0x4, offset = 0x4, fixed_abs, tag = 'smem constant byte address 0x4 - core index']
  #allocation1 [shape = 'u32[144,128]{1,0:T(1,128)}', space=vmem, size = 0x12000, scoped, tag = 'internal scratch']
  #allocation2 [shape = 'f32[8,128]{1,0:T(8,128)}', space=vmem, size = 0x1000, scoped, tag = 'scratch operand']
  %s0 = inlined_call_operand.hbm [shape: f32[8,128], index: 0, kind: input, shape index: {}]
  %s1 = inlined_call_operand.hbm [shape: f32[128,128], index: 1, kind: input, shape index: {}]
  %s2 = inlined_call_operand.vmem [shape: f32[1,128], index: 2, kind: input, shape index: {}]
  %s3 = inlined_call_operand.vmem [shape: f32[8,128], index: 3, kind: input, shape index: {}]
  %s4 = inlined_call_operand.hbm [shape: f32[8,128], index: 4, kind: output, shape index: {}]
  %s5 = sld [smem:[#allocation0]]
  $region42: #{tpu_custom_call.1} parent=0
    _
  %s7 = ssub.s32 1, %s5
  %s8 = scalar_select 0, %s7, %s5
  $region1: #{tpu_custom_call.1} parent=0
    #allocation3 [shape = 'u8[4096]{0}', space=vmem, size = 0x1000, scoped, tag = 'input window, operand 0, single buffered']
    #allocation4 [shape = 's32[1]{0}', space=sflag, size = 0x4, scoped, tag = 'scoped memory for tpu_custom_call.1']
    #allocation5 [shape = 's32[1]{0}', space=sflag, size = 0x4, scoped, tag = 'scoped memory for tpu_custom_call.1']
    #allocation6 [shape = 'u8[65536]{0}', space=vmem, size = 0x10000, scoped, tag = 'input window, operand 1, single buffered']
    #allocation7 [shape = 's32[1]{0}', space=sflag, size = 0x4, scoped, tag = 'scoped memory for tpu_custom_call.1']
    #allocation8 [shape = 'u8[4096]{0}', space=vmem, size = 0x1000, scoped, tag = 'output window, operand 0, single buffered']
    %9 = vsyncpa [#allocation4], 0
    %10 = vsyncpa [#allocation7], 0
    %11 = vsyncpa [#allocation5], 0
    // Predicated region
    $region2: #{tpu_custom_call.1} parent=1 // pred_check
      _
    $region3: #{tpu_custom_call.1} parent=1 // pred_check_branch
      %13 = sbr.rel (0) target = $region5
    $region4: #{tpu_custom_call.1} parent=1 // pred_region
      %s15 = ssub.s32 128, 128
      %16 = vsyncadd [#allocation4], %s15
      %s18 = sshll.u32 [#allocation3], 4
      %s19 = int_to_ptr.vmem [resolvable:$true] %s18
      %21 = dma.hbm_to_vmem [thread:$0]  %s0, 128, %s19, [#allocation4]
    $region5: #{tpu_custom_call.1} parent=1 // pred_fallthru
      _
    // Predicated region
    $region6: #{tpu_custom_call.1} parent=1 // pred_check
      _
    $region7: #{tpu_custom_call.1} parent=1 // pred_check_branch
      %23 = sbr.rel (0) target = $region9
    $region8: #{tpu_custom_call.1} parent=1 // pred_region
      %s25 = ssub.s32 2048, 2048
      %26 = vsyncadd [#allocation7], %s25
      %s27 = sshll.u32 [#allocation6], 4
      %s28 = int_to_ptr.vmem [resolvable:$true] %s27
      %33 = dma.hbm_to_vmem [thread:$0]  %s1, 2048, %s28, [#allocation7], 128, 128, 8
    $region9: #{tpu_custom_call.1} parent=1 // pred_fallthru
      _
    // Predicated region
    $region10: #{tpu_custom_call.1} parent=1 // pred_check
      _
    $region11: #{tpu_custom_call.1} parent=1 // pred_check_branch
      %35 = sbr.rel (0) target = $region13
    $region12: #{tpu_custom_call.1} parent=1 // pred_region
      _
    $region13: #{tpu_custom_call.1} parent=1 // pred_fallthru
      _
    // Predicated region
    $region14: #{tpu_custom_call.1} parent=1 // pred_check
      _
    $region15: #{tpu_custom_call.1} parent=1 // pred_check_branch
      %37 = sbr.rel (0) target = $region17
    $region16: #{tpu_custom_call.1} parent=1 // pred_region
      _
    $region17: #{tpu_custom_call.1} parent=1 // pred_fallthru
      _
    // Predicated region
    $region18: #{tpu_custom_call.1} parent=1 // pred_check
      _
    $region19: #{tpu_custom_call.1} parent=1 // pred_check_branch
      %39 = sbr.rel (0) target = $region21
    $region20: #{tpu_custom_call.1} parent=1 // pred_region
      %40 = dma.done [#allocation4], 128
    $region21: #{tpu_custom_call.1} parent=1 // pred_fallthru
      _
    // Predicated region
    $region22: #{tpu_custom_call.1} parent=1 // pred_check
      _
    $region23: #{tpu_custom_call.1} parent=1 // pred_check_branch
      %42 = sbr.rel (0) target = $region25
    $region24: #{tpu_custom_call.1} parent=1 // pred_region
      %43 = dma.done [#allocation7], 2048
    $region25: #{tpu_custom_call.1} parent=1 // pred_fallthru
      _
    %p44 = scmp.eq.s32.totalorder 0, 0
    // Predicated region
    $region26: #{tpu_custom_call.1} parent=1 // pred_check
      %p45 = pneg %p44
    $region27: #{tpu_custom_call.1} parent=1 // pred_check_branch
      %47 = sbr.rel (%p45) target = $region29
    $region28: #{tpu_custom_call.1} parent=1 // pred_region
      %48 = vst [vmem:[#allocation2] sm:$0xff] 0.0
    $region29: #{tpu_custom_call.1} parent=1 // pred_fallthru
      _
    %v49 = vld [vmem:[#allocation2] sm:$0xff]
    %v50 = vld [vmem:[#allocation3] sm:$0xff]
    %v51 = vld [vmem:[#allocation6] sm:$0xff]
    %v52 = vld [vmem:[#allocation6 + $0x8] sm:$0xff]
    %v53 = vld [vmem:[#allocation6 + $0x10] sm:$0xff]
    %v54 = vld [vmem:[#allocation6 + $0x18] sm:$0xff]
    %v55 = vld [vmem:[#allocation6 + $0x20] sm:$0xff]
    %v56 = vld [vmem:[#allocation6 + $0x28] sm:$0xff]
    %v57 = vld [vmem:[#allocation6 + $0x30] sm:$0xff]
    %v58 = vld [vmem:[#allocation6 + $0x38] sm:$0xff]
    %v59 = vld [vmem:[#allocation6 + $0x40] sm:$0xff]
    %v60 = vld [vmem:[#allocation6 + $0x48] sm:$0xff]
    %v61 = vld [vmem:[#allocation6 + $0x50] sm:$0xff]
    %v62 = vld [vmem:[#allocation6 + $0x58] sm:$0xff]
    %v63 = vld [vmem:[#allocation6 + $0x60] sm:$0xff]
    %v64 = vld [vmem:[#allocation6 + $0x68] sm:$0xff]
    %v65 = vld [vmem:[#allocation6 + $0x70] sm:$0xff]
    %v66 = vld [vmem:[#allocation6 + $0x78] sm:$0xff]
    %67 = vmatprep.subr.mxu0 0.0
    %68 = vmatpush1.xpose.msra.mxu0 %v51
    %69 = vmatprep.subr.mxu0 0.0
    %70 = vmatpush1.xpose.msra.mxu0 %v52
    %71 = vmatprep.subr.mxu0 0.0
    %72 = vmatpush1.xpose.msra.mxu0 %v53
    %73 = vmatprep.subr.mxu0 0.0
    %74 = vmatpush1.xpose.msra.mxu0 %v54
    %75 = vmatprep.subr.mxu0 0.0
    %76 = vmatpush1.xpose.msra.mxu0 %v55
    %77 = vmatprep.subr.mxu0 0.0
    %78 = vmatpush1.xpose.msra.mxu0 %v56
    %79 = vmatprep.subr.mxu0 0.0
    %80 = vmatpush1.xpose.msra.mxu0 %v57
    %81 = vmatprep.subr.mxu0 0.0
    %82 = vmatpush1.xpose.msra.mxu0 %v58
    %83 = vmatprep.subr.mxu0 0.0
    %84 = vmatpush1.xpose.msra.mxu0 %v59
    %85 = vmatprep.subr.mxu0 0.0
    %86 = vmatpush1.xpose.msra.mxu0 %v60
    %87 = vmatprep.subr.mxu0 0.0
    %88 = vmatpush1.xpose.msra.mxu0 %v61
    %89 = vmatprep.subr.mxu0 0.0
    %90 = vmatpush1.xpose.msra.mxu0 %v62
    %91 = vmatprep.subr.mxu0 0.0
    %92 = vmatpush1.xpose.msra.mxu0 %v63
    %93 = vmatprep.subr.mxu0 0.0
    %94 = vmatpush1.xpose.msra.mxu0 %v64
    %95 = vmatprep.subr.mxu0 0.0
    %96 = vmatpush1.xpose.msra.mxu0 %v65
    %97 = vmatprep.subr.mxu0 0.0
    %98 = vmatpush1.xpose.msra.mxu0 %v66
    %99 = vmatprep.subr.mxu0 0.0
    %100 = vmatpush1.xpose.msra.mxu0 0.0
    %101 = vmatprep.subr.mxu0 0.0
    %102 = vmatpush1.xpose.msra.mxu0 0.0
    %103 = vmatprep.subr.mxu0 0.0
    %104 = vmatpush1.xpose.msra.mxu0 0.0
    %105 = vmatprep.subr.mxu0 0.0
    %106 = vmatpush1.xpose.msra.mxu0 0.0
    %107 = vmatprep.subr.mxu0 0.0
    %108 = vmatpush1.xpose.msra.mxu0 0.0
    %109 = vmatprep.subr.mxu0 0.0
    %110 = vmatpush1.xpose.msra.mxu0 0.0
    %111 = vmatprep.subr.mxu0 0.0
    %112 = vmatpush1.xpose.msra.mxu0 0.0
    %113 = vmatprep.subr.mxu0 0.0
    %114 = vmatpush1.xpose.msra.mxu0 0.0
    %115 = vmatprep.subr.mxu0 0.0
    %116 = vmatpush1.xpose.msra.mxu0 0.0
    %117 = vmatprep.subr.mxu0 0.0
    %118 = vmatpush1.xpose.msra.mxu0 0.0
    %119 = vmatprep.subr.mxu0 0.0
    %120 = vmatpush1.xpose.msra.mxu0 0.0
    %121 = vmatprep.subr.mxu0 0.0
    %122 = vmatpush1.xpose.msra.mxu0 0.0
    %123 = vmatprep.subr.mxu0 0.0
    %124 = vmatpush1.xpose.msra.mxu0 0.0
    %125 = vmatprep.subr.mxu0 0.0
    %126 = vmatpush1.xpose.msra.mxu0 0.0
    %127 = vmatprep.subr.mxu0 0.0
    %128 = vmatpush1.xpose.msra.mxu0 0.0
    %129 = vmatprep.subr.mxu0 0.0
    %130 = vmatpush1.xpose.msra.mxu0 0.0
    %131 = vmatprep.mubr.f32.mxu0 0.0
    %132 = vmatmul.mubr.f32.gmra.mrb[0].mxu0 %v50
    %v133 = vpop.f32.mrb[0].mxu0
    %v134 = vadd.f32 0.0, %v133
    %v135 = vpop.f32.mrb[0].mxu0
    %136 = vdwg.mxu0
    %v137 = vadd.f32 %v49, %v134
    %138 = vst [vmem:[#allocation2] sm:$0xff] %v137
    // Predicated region
    $region30: #{tpu_custom_call.1} parent=1 // pred_check
      %p139 = pneg %p44
    $region31: #{tpu_custom_call.1} parent=1 // pred_check_branch
      %141 = sbr.rel (%p139) target = $region33
    $region32: #{tpu_custom_call.1} parent=1 // pred_region
      %v142 = vld [vmem:[#allocation2] sm:$0xff]
      %v143 = vmul.f32 %v142, 0.088388346
      %v144 = vld [vmem:[%s2] sm:$0x1]
      %v146 = vlaneseq
      %v147 = vshrl.u32 %v146, 7
      %v148 = vsub.s32 0, %v147
      %v149 = vrot.slane %v144, %v148
      %v151 = vadd.f32 %v143, %v149
      %v152 = vld [vmem:[%s3] sm:$0xff]
      %v153 = vmul.f32 %v152, 0.7
      %v154 = vadd.f32 %v151, %v153
      %155 = vst [vmem:[#allocation8] sm:$0xff] %v154
    $region33: #{tpu_custom_call.1} parent=1 // pred_fallthru
      _
    // Predicated region
    $region34: #{tpu_custom_call.1} parent=1 // pred_check
      _
    $region35: #{tpu_custom_call.1} parent=1 // pred_check_branch
      %157 = sbr.rel (0) target = $region37
    $region36: #{tpu_custom_call.1} parent=1 // pred_region
      %s159 = ssub.s32 128, 128
      %160 = vsyncadd [#allocation5], %s159
      %s162 = sshll.u32 [#allocation8], 4
      %s163 = int_to_ptr.vmem [resolvable:$true] %s162
      %165 = dma.vmem_to_hbm [thread:$0]  %s163, 128, %s4, [#allocation5]
    $region37: #{tpu_custom_call.1} parent=1 // pred_fallthru
      _
    // Predicated region
    $region38: #{tpu_custom_call.1} parent=1 // pred_check
      _
    $region39: #{tpu_custom_call.1} parent=1 // pred_check_branch
      %167 = sbr.rel (0) target = $region41
    $region40: #{tpu_custom_call.1} parent=1 // pred_region
      %168 = dma.done [#allocation5], 128
    $region41: #{tpu_custom_call.1} parent=1 // pred_fallthru
      _
    %169 = vsyncpa [#allocation4], 1
    %170 = vsyncpa [#allocation7], 1
    %171 = vsyncpa [#allocation5], 1

</llo_original>
